<compile_context>
chip_gen: v6e
topology: v6e:2x2x1
jax: 0.10.0
libtpu: 0.0.40
codegen_flags: <defaults>
</compile_context>

<pallas_src>
import functools

import jax
import jax.numpy as jnp
from jax.experimental import pallas as pl
from jax.experimental.pallas import tpu as pltpu


def _round_up(v, m):
    return ((v + m - 1) // m) * m


def fold_kernel(x_ref, n_ref, inv_nn_ref, o_ref, *, leak):
    """One batch tile.

    x_ref:      (TB, W) input tile (VMEM)
    n_ref:      (1,  W) fold normal n (VMEM, f32)
    inv_nn_ref: (1,)    1 / (n @ n)   (SMEM scalar, f32)
    o_ref:      (TB, W) output tile (VMEM)
    """
    x = x_ref[...].astype(jnp.float32)                       # (TB, W)
    n = n_ref[...]                                           # (1, W)
    inv_nn = inv_nn_ref[0]                                   # scalar

    # scales = (x @ n) / (n @ n) as a per-row lane reduce (XLU) + scalar mul.
    scales = jnp.sum(x * n, axis=-1, keepdims=True) * inv_nn  # (TB, 1)

    # Leaky indicator folded with the projection into one column scale:
    #   out = x + 2*ind*(n - scales*n) = x + (2*ind*(1 - scales)) * n
    ind = jnp.where(scales > 1.0, 1.0, leak)                  # (TB, 1)
    t = 2.0 * ind * (1.0 - scales)                            # (TB, 1)

    o_ref[...] = (x + t * n).astype(o_ref.dtype)


def _choose_block_b(B, W, itemsize):
    """Pick a batch tile size: big enough to hit the pipeline plateau,
    small enough to fit VMEM, and leaving >=2 tiles for large B (v7x TCs)."""
    if B <= 1024:
        # Single full-extent tile; full array dims always satisfy (8,128).
        return B, 1
    try:
        vmem_bytes = pltpu.get_tpu_info().vmem_capacity_bytes
    except Exception:  # pragma: no cover - conservative fallback
        vmem_bytes = 64 * 1024 * 1024          # v7x per-TC size
    budget = vmem_bytes // 8                   # ~8-16 MiB of tile traffic
    bytes_per_row = 4 * W * itemsize           # x + out, double-buffered
    block_b = budget // max(bytes_per_row, 1)
    block_b = max(512, min(4096, block_b))     # 512+ rows -> ~85% HBM roofline
    # Ensure at least 2 tiles so the "parallel" axis can shard across v7x TCs.
    block_b = min(block_b, _round_up(pl.cdiv(B, 2), 8))
    block_b = max(8, (block_b // 8) * 8)
    return block_b, pl.cdiv(B, block_b)


def fold(x, n, *, leak=0.0, block_b=None, donate_x=False):
    """Apply the Fold layer. x: (B, W), n: (W,). Returns (B, W) in x.dtype."""
    B, W = x.shape

    # Zero-norm guard mirroring the PyTorch parameter patch-up.
    # NOTE: for near-zero n this is numerically explosive (scales ~ 1/1e-16),
    # exactly like the reference module.
    n = n.astype(jnp.float32)
    nn = jnp.sum(n * n)
    n = jnp.where(nn == 0.0, n + 1e-8, n)
    nn = jnp.sum(n * n)

    n_row = n.reshape(1, W)                       # (1, W) VMEM constant
    inv_nn = (1.0 / nn).reshape(1)                # (1,)  SMEM scalar

    if block_b is None:
        block_b, num_tiles = _choose_block_b(B, W, x.dtype.itemsize)
    else:
        block_b = min(int(block_b), B)
        num_tiles = pl.cdiv(B, block_b)

    # vmem limit ~2x the real double-buffered footprint (in + out tiles) + slack.
    tile_bytes = block_b * W * x.dtype.itemsize
    vmem_limit = int(min(100 * 1024 * 1024,
                         max(4 * 1024 * 1024, 8 * tile_bytes + (2 << 20))))

    kernel = functools.partial(fold_kernel, leak=float(leak))

    out = pl.pallas_call(
        kernel,
        out_shape=jax.ShapeDtypeStruct((B, W), x.dtype),
        grid=(num_tiles,),
        in_specs=[
            pl.BlockSpec((block_b, W), lambda i: (i, 0)),          # x tile
            pl.BlockSpec((1, W), lambda i: (0, 0)),                # n row
            pl.BlockSpec(memory_space=pltpu.MemorySpace.SMEM),     # 1/(n@n)
        ],
        out_specs=pl.BlockSpec((block_b, W), lambda i: (i, 0)),
        compiler_params=pltpu.CompilerParams(
            dimension_semantics=("parallel",),
            vmem_limit_bytes=vmem_limit,
        ),
        # Only pays off when the caller actually donates x (otherwise XLA
        # inserts a defensive copy), so it is opt-in.
        input_output_aliases=({0: 0} if donate_x else {}),
    )(x, n_row, inv_nn)

    return out


def fold_ref(x, n, leak=0.0):
    """Pure-JAX reference mirroring the PyTorch forward."""
    scales = (x @ n) / (n @ n)
    indicator = (scales > 1.0).astype(x.dtype)
    indicator = indicator + (1.0 - indicator) * leak
    projection = scales[:, None] * n
    return x + 2.0 * indicator[:, None] * (n - projection)


if __name__ == "__main__":
    key = jax.random.PRNGKey(0)
    k_n, k_x, k_x2 = jax.random.split(key, 3)

    batch, width = 16, 32
    leak = 0.1

    # Deterministic init matching nn.Parameter(torch.randn(width) * (2/width)**0.5)
    n = jax.random.normal(k_n, (width,), dtype=jnp.float32) * (2.0 / width) ** 0.5
    x = jax.random.normal(k_x, (batch, width), dtype=jnp.float32)

    out = fold(x, n, leak=leak)
    out = jax.block_until_ready(out)
    ref = fold_ref(x, n, leak=leak)
    assert out.shape == (batch, width)
    assert jnp.allclose(out, ref, atol=1e-5, rtol=1e-5), "mismatch vs reference"

    # Exercise the partial (masked) edge block: batch not divisible by block_b.
    batch2 = 19
    x2 = jax.random.normal(k_x2, (batch2, width), dtype=jnp.float32)
    out2 = jax.block_until_ready(fold(x2, n, leak=leak, block_b=8))
    ref2 = fold_ref(x2, n, leak=leak)
    assert out2.shape == (batch2, width)
    assert jnp.allclose(out2, ref2, atol=1e-5, rtol=1e-5), "mismatch (edge block)"

    print("KERNEL_OK")
</pallas_src>

<mosaic_0001>
module attributes {stable_mosaic.version = 11 : i64} {
  func.func @fold_kernel(%arg0: i32, %arg1: memref<16x32xf32, #tpu.memory_space<vmem>>, %arg2: memref<1x32xf32, #tpu.memory_space<vmem>>, %arg3: memref<1xf32, #tpu.memory_space<smem>>, %arg4: memref<16x32xf32, #tpu.memory_space<vmem>>) attributes {dimension_semantics = [#tpu.dimension_semantics<parallel>], iteration_bounds = array<i64: 1>, scalar_prefetch = 0 : i64, scratch_operands = 0 : i64, tpu.core_type = #tpu.core_type<tc>, window_params = [{transform_indices = @transform_0, window_bounds = array<i64: 16, 32>}, {pipeline_mode = #tpu.pipeline_mode<synchronous>, transform_indices = @transform_1, window_bounds = array<i64: 1, 32>}, {transform_indices = @transform_2, window_bounds = array<i64: 1>}, {transform_indices = @transform_3, window_bounds = array<i64: 16, 32>}]} {
    %c0 = arith.constant 0 : index
    %c0_0 = arith.constant 0 : index
    %0 = vector.load %arg1[%c0, %c0_0] : memref<16x32xf32, #tpu.memory_space<vmem>>, vector<16x32xf32>
    %c0_1 = arith.constant 0 : index
    %c0_2 = arith.constant 0 : index
    %1 = vector.load %arg2[%c0_1, %c0_2] : memref<1x32xf32, #tpu.memory_space<vmem>>, vector<1x32xf32>
    %c0_3 = arith.constant 0 : index
    %2 = memref.load %arg3[%c0_3] : memref<1xf32, #tpu.memory_space<smem>>
    %3 = vector.broadcast %1 : vector<1x32xf32> to vector<16x32xf32>
    %4 = arith.mulf %0, %3 : vector<16x32xf32>
    %cst = arith.constant dense<0.000000e+00> : vector<16xf32>
    %5 = vector.multi_reduction <add>, %4, %cst [1] : vector<16x32xf32> to vector<16xf32>
    %6 = vector.shape_cast %5 : vector<16xf32> to vector<16x1xf32>
    %7 = vector.broadcast %2 : f32 to vector<16x1xf32>
    %8 = arith.mulf %6, %7 : vector<16x1xf32>
    %cst_4 = arith.constant 1.000000e+00 : f32
    %9 = vector.broadcast %cst_4 : f32 to vector<16x1xf32>
    %10 = arith.cmpf ogt, %8, %9 : vector<16x1xf32>
    %cst_5 = arith.constant 1.000000e+00 : f32
    %cst_6 = arith.constant 1.000000e-01 : f32
    %11 = vector.broadcast %cst_5 : f32 to vector<16x1xf32>
    %12 = vector.broadcast %cst_6 : f32 to vector<16x1xf32>
    %13 = arith.select %10, %11, %12 : vector<16x1xi1>, vector<16x1xf32>
    %cst_7 = arith.constant 2.000000e+00 : f32
    %14 = vector.broadcast %cst_7 : f32 to vector<16x1xf32>
    %15 = arith.mulf %14, %13 : vector<16x1xf32>
    %cst_8 = arith.constant 1.000000e+00 : f32
    %16 = vector.broadcast %cst_8 : f32 to vector<16x1xf32>
    %17 = arith.subf %16, %8 : vector<16x1xf32>
    %18 = arith.mulf %15, %17 : vector<16x1xf32>
    %19 = vector.broadcast %18 : vector<16x1xf32> to vector<16x32xf32>
    %20 = vector.broadcast %1 : vector<1x32xf32> to vector<16x32xf32>
    %21 = arith.mulf %19, %20 : vector<16x32xf32>
    %22 = arith.addf %0, %21 : vector<16x32xf32>
    %c0_9 = arith.constant 0 : index
    %c0_10 = arith.constant 0 : index
    %23 = vector.load %arg4[%c0_9, %c0_10] : memref<16x32xf32, #tpu.memory_space<vmem>>, vector<16x32xf32>
    tpu.vector_store %arg4[%c0_9, %c0_10], %22 {strides = array<i32>} : memref<16x32xf32, #tpu.memory_space<vmem>>, vector<16x32xf32>,
    return
  }
  func.func @transform_0(%arg0: i32) -> (i32, i32) {
    %c0_i32 = arith.constant 0 : i32
    %c0_i32_0 = arith.constant 0 : i32
    return %arg0, %c0_i32 : i32, i32
  }
  func.func @transform_1(%arg0: i32) -> (i32, i32) {
    %c0_i32 = arith.constant 0 : i32
    %c0_i32_0 = arith.constant 0 : i32
    %c0_i32_1 = arith.constant 0 : i32
    return %c0_i32, %c0_i32_0 : i32, i32
  }
  func.func @transform_2(%arg0: i32) -> i32 {
    %c0_i32 = arith.constant 0 : i32
    %c0_i32_0 = arith.constant 0 : i32
    return %c0_i32 : i32
  }
  func.func @transform_3(%arg0: i32) -> (i32, i32) {
    %c0_i32 = arith.constant 0 : i32
    %c0_i32_0 = arith.constant 0 : i32
    return %arg0, %c0_i32 : i32, i32
  }
}

</mosaic_0001>

<llo_original>
// kernel: tpu_custom_call.1
$region0: #{tpu_custom_call.1}
  #allocation0 [shape = 'u32[]', space=smem, size = 0x4, offset = 0x4, fixed_abs, tag = 'smem constant byte address 0x4 - core index']
  #allocation1 [shape = 'u32[144,128]{1,0:T(1,128)}', space=vmem, size = 0x12000, scoped, tag = 'internal scratch']
  #allocation2 [shape = 'f32[1]{0:T(128)S(6)}', space=smem, size = 0x200, scoped, tag = 'scoped memory for tpu_custom_call.1']
  %s0 = inlined_call_operand.hbm [shape: f32[16,32], index: 0, kind: input, shape index: {}]
  %s1 = inlined_call_operand.vmem [shape: f32[1,32], index: 1, kind: input, shape index: {}]
  %s2 = inlined_call_operand.<no memory space> [shape: f32[1], index: 2, kind: input, shape index: {}]
  %s3 = inlined_call_operand.hbm [shape: f32[16,32], index: 3, kind: output, shape index: {}]
  %s4 = sld [smem:[#allocation0]]
  $region26: #{tpu_custom_call.1} parent=0
    _
  %s6 = ssub.s32 1, %s4
  %s7 = scalar_select 0, %s6, %s4
  %8 = sst [smem:[#allocation2]] %s2
  $region1: #{tpu_custom_call.1} parent=0
    #allocation3 [shape = 'u8[8192]{0}', space=vmem, size = 0x2000, scoped, tag = 'input window, operand 0, single buffered']
    #allocation4 [shape = 's32[1]{0}', space=sflag, size = 0x4, scoped, tag = 'scoped memory for tpu_custom_call.1']
    #allocation5 [shape = 's32[1]{0}', space=sflag, size = 0x4, scoped, tag = 'scoped memory for tpu_custom_call.1']
    #allocation6 [shape = 'u8[8192]{0}', space=vmem, size = 0x2000, scoped, tag = 'output window, operand 0, single buffered']
    %9 = vsyncpa [#allocation4], 0
    %10 = vsyncpa [#allocation5], 0
    // Predicated region
    $region2: #{tpu_custom_call.1} parent=1 // pred_check
      _
    $region3: #{tpu_custom_call.1} parent=1 // pred_check_branch
      %12 = sbr.rel (0) target = $region5
    $region4: #{tpu_custom_call.1} parent=1 // pred_region
      %s14 = ssub.s32 256, 256
      %15 = vsyncadd [#allocation4], %s14
      %s16 = sshll.u32 [#allocation3], 4
      %s17 = int_to_ptr.vmem [resolvable:$true] %s16
      %22 = dma.hbm_to_vmem [thread:$0]  %s0, 256, %s17, [#allocation4], 128, 128, 8
    $region5: #{tpu_custom_call.1} parent=1 // pred_fallthru
      _
    // Predicated region
    $region6: #{tpu_custom_call.1} parent=1 // pred_check
      _
    $region7: #{tpu_custom_call.1} parent=1 // pred_check_branch
      %24 = sbr.rel (0) target = $region9
    $region8: #{tpu_custom_call.1} parent=1 // pred_region
      _
    $region9: #{tpu_custom_call.1} parent=1 // pred_fallthru
      _
    // Predicated region
    $region10: #{tpu_custom_call.1} parent=1 // pred_check
      _
    $region11: #{tpu_custom_call.1} parent=1 // pred_check_branch
      %26 = sbr.rel (0) target = $region13
    $region12: #{tpu_custom_call.1} parent=1 // pred_region
      _
    $region13: #{tpu_custom_call.1} parent=1 // pred_fallthru
      _
    // Predicated region
    $region14: #{tpu_custom_call.1} parent=1 // pred_check
      _
    $region15: #{tpu_custom_call.1} parent=1 // pred_check_branch
      %28 = sbr.rel (0) target = $region17
    $region16: #{tpu_custom_call.1} parent=1 // pred_region
      %29 = dma.done [#allocation4], 256
    $region17: #{tpu_custom_call.1} parent=1 // pred_fallthru
      _
    %v30 = vld [vmem:[#allocation3] sm:$0xff]
    %v31 = vld [vmem:[#allocation3 + $0x8] sm:$0xff]
    %v32 = vld [vmem:[%s1] sm:$0x1]
    %s33 = sld [smem:[#allocation2]]
    %v35 = vlaneseq
    %v36 = vshrl.u32 %v35, 7
    %v37 = vsub.s32 0, %v36
    %v38 = vrot.slane %v32, %v37
    %v40 = vmul.f32 %v30, %v38
    %v41 = vmul.f32 %v31, %v38
    %vm42 = vcmask 261120
    %v43 = vsel %vm42, %v40, 0.0
    %44 = vadd.xlane.f32.xlu0 %v43
    %v45 = vpop.xlane.xlu0 %44
    %v46 = vsel %vm42, %v41, 0.0
    %47 = vadd.xlane.f32.xlu0 %v46
    %v48 = vpop.xlane.xlu0 %47
    %v49 = vstv %s33
    %v50 = vmul.f32 %v45, %v49
    %v51 = vmul.f32 %v48, %v49
    %vm52 = vcmp.gt.f32.partialorder %v50, 1.0
    %vm53 = vcmp.gt.f32.partialorder %v51, 1.0
    %v54 = vsel %vm52, 1.0, 0.1
    %v55 = vsel %vm53, 1.0, 0.1
    %v56 = vmul.f32 %v54, 2.0
    %v57 = vmul.f32 %v55, 2.0
    %v58 = vsub.f32 1.0, %v50
    %v59 = vsub.f32 1.0, %v51
    %v60 = vmul.f32 %v56, %v58
    %v61 = vmul.f32 %v57, %v59
    %v62 = vmul.f32 %v60, %v38
    %v63 = vmul.f32 %v61, %v38
    %v64 = vadd.f32 %v30, %v62
    %v65 = vadd.f32 %v31, %v63
    %66 = vst.msk [vmem:[#allocation6] sm:$0xff] %vm42, %v64
    %67 = vst.msk [vmem:[#allocation6 + $0x8] sm:$0xff] %vm42, %v65
    // Predicated region
    $region18: #{tpu_custom_call.1} parent=1 // pred_check
      _
    $region19: #{tpu_custom_call.1} parent=1 // pred_check_branch
      %69 = sbr.rel (0) target = $region21
    $region20: #{tpu_custom_call.1} parent=1 // pred_region
      %s71 = ssub.s32 256, 256
      %72 = vsyncadd [#allocation5], %s71
      %s73 = sshll.u32 [#allocation6], 4
      %s74 = int_to_ptr.vmem [resolvable:$true] %s73
      %79 = dma.vmem_to_hbm [thread:$0]  %s74, 256, %s3, [#allocation5], 128, 128, 8
    $region21: #{tpu_custom_call.1} parent=1 // pred_fallthru
      _
    // Predicated region
    $region22: #{tpu_custom_call.1} parent=1 // pred_check
      _
    $region23: #{tpu_custom_call.1} parent=1 // pred_check_branch
      %81 = sbr.rel (0) target = $region25
    $region24: #{tpu_custom_call.1} parent=1 // pred_region
      %82 = dma.done [#allocation5], 256
    $region25: #{tpu_custom_call.1} parent=1 // pred_fallthru
      _
    %83 = vsyncpa [#allocation4], 1
    %84 = vsyncpa [#allocation5], 1

</llo_original>
